<compile_context>
chip_gen: v6e
topology: v6e:2x2x1
jax: 0.10.0
libtpu: 0.0.40
codegen_flags: <defaults>
</compile_context>

<pallas_src>
import functools

import jax
import jax.numpy as jnp
from jax.experimental import pallas as pl
from jax.experimental.pallas import tpu as pltpu


def _round_up(a, b):
    return (a + b - 1) // b * b


def _default_elementwise_bf16():
    """bf16 bias-add/tanh only on chips with a bf16 VPU/EUP (v6e, v7x)."""
    try:
        kind = jax.devices()[0].device_kind.lower()
    except Exception:
        return False
    return ("v6" in kind) or ("v7" in kind)


def ffnet_kernel(x_ref, w_in_ref, b_in_ref, w_hid_ref, b_hid_ref, w_out_ref,
                 o_ref, *, depth, dd, elementwise_bf16):
    bf = jnp.bfloat16
    ew = bf if elementwise_bf16 else jnp.float32

    def mxu(h):
        # bf16 operands into the MXU; h is already bf16 on the bf16 path.
        return h if h.dtype == bf else h.astype(bf)

    # linearIn + tanh (bf16 MXU operands, f32 accumulation, `ew` elementwise;
    # biases are pre-cast to `ew` in prepare_ffnet_params).
    acc = jnp.dot(mxu(x_ref[...]), w_in_ref[...],
                  preferred_element_type=jnp.float32)
    h = jnp.tanh(acc.astype(ew) + b_in_ref[...])

    # depth hidden layers (static unroll: small fixed depth).
    for l in range(depth):
        acc = jnp.dot(mxu(h), w_hid_ref[l], preferred_element_type=jnp.float32)
        h = jnp.tanh(acc.astype(ew) + b_hid_ref[l])

    # linearOut (out_bias=False).  Store only the real dd columns -> the HBM
    # writeback is (tn, dd) instead of a 64x lane-padded f32 slab.
    out = jnp.dot(mxu(h), w_out_ref[...], preferred_element_type=jnp.float32)
    o_ref[...] = out[:, :dd].astype(o_ref.dtype)


def prepare_ffnet_params(w_in, b_in, w_hid, b_hid, w_out, *,
                         elementwise_bf16, lane=128):
    """One-time padding/casting of weights (hoisted out of the per-call path)."""
    d, width = w_in.shape
    depth = w_hid.shape[0]
    dd = w_out.shape[1]
    wp = _round_up(width, lane)      # keep wp=128 for width=32 (do NOT pad to 256)
    ddp = _round_up(dd, lane)
    bias_dtype = jnp.bfloat16 if elementwise_bf16 else jnp.float32

    # Zero padding keeps padded lanes exactly 0 through tanh(0)=0, and the
    # zero rows of w_out kill any padded-lane contribution.
    w_in_p = jnp.zeros((d, wp), jnp.bfloat16).at[:, :width].set(
        w_in.astype(jnp.bfloat16))
    b_in_p = jnp.zeros((1, wp), bias_dtype).at[:, :width].set(
        b_in.reshape(1, width).astype(bias_dtype))
    w_hid_p = jnp.zeros((depth, wp, wp), jnp.bfloat16).at[:, :width, :width].set(
        w_hid.astype(jnp.bfloat16))
    b_hid_p = jnp.zeros((depth, 1, wp), bias_dtype).at[:, :, :width].set(
        b_hid.reshape(depth, 1, width).astype(bias_dtype))
    w_out_p = jnp.zeros((wp, ddp), jnp.bfloat16).at[:width, :dd].set(
        w_out.astype(jnp.bfloat16))

    return dict(w_in=w_in_p, b_in=b_in_p, w_hid=w_hid_p, b_hid=b_hid_p,
                w_out=w_out_p, d=d, width=width, depth=depth, dd=dd,
                wp=wp, ddp=ddp, elementwise_bf16=elementwise_bf16)


def ffnet_forward(x, params, *, tile_n=4096):
    n, d = x.shape
    assert d == params["d"]
    depth, dd = params["depth"], params["dd"]
    wp, ddp = params["wp"], params["ddp"]
    ew_bf16 = params["elementwise_bf16"]

    # Batch tile: multiple of 8 sublanes, <= tile_n; pad batch to a multiple.
    # Default 4096 amortizes the ~0.35 us per-grid-step overhead while the
    # double-buffered (tn, d)/(tn, dd) tiles + (tn, wp) h stay ~10 MB (safe on
    # v7x's 64 MiB physical / 32 MiB default scoped VMEM).
    tn = _round_up(min(tile_n, _round_up(n, 8)), 8)
    n_pad = _round_up(n, tn)
    grid = (n_pad // tn,)

    xp = x if n_pad == n else jnp.zeros((n_pad, d), x.dtype).at[:n, :].set(x)

    w_bytes = (params["w_in"].size + params["w_hid"].size
               + params["w_out"].size) * 2
    b_bytes = ((params["b_in"].size + params["b_hid"].size)
               * params["b_in"].dtype.itemsize)
    cost = pl.CostEstimate(
        flops=int(2 * n_pad * (d * wp + depth * wp * wp + wp * ddp)),
        transcendentals=int(n_pad * wp * (depth + 1)),
        bytes_accessed=int(n_pad * (d + dd) * 4 + w_bytes + b_bytes),
    )

    out = pl.pallas_call(
        functools.partial(ffnet_kernel, depth=depth, dd=dd,
                          elementwise_bf16=ew_bf16),
        out_shape=jax.ShapeDtypeStruct((n_pad, dd), x.dtype),
        grid=grid,
        in_specs=[
            # activation tile streams over the batch grid axis
            pl.BlockSpec((tn, d), lambda i: (i, 0)),
            # weights / biases stay VMEM-resident (same block every step)
            pl.BlockSpec((d, wp), lambda i: (0, 0)),
            pl.BlockSpec((1, wp), lambda i: (0, 0)),
            pl.BlockSpec((depth, wp, wp), lambda i: (0, 0, 0)),
            pl.BlockSpec((depth, 1, wp), lambda i: (0, 0, 0)),
            pl.BlockSpec((wp, ddp), lambda i: (0, 0)),
        ],
        # Unpadded output columns: dd equals the full last dim, so this is a
        # legal block shape and avoids the 64x-padded HBM writeback.
        out_specs=pl.BlockSpec((tn, dd), lambda i: (i, 0)),
        compiler_params=pltpu.CompilerParams(
            dimension_semantics=("parallel",)),
        cost_estimate=cost,
    )(xp, params["w_in"], params["b_in"], params["w_hid"], params["b_hid"],
      params["w_out"])

    return out[:n, :]


def ffnet_reference(x, w_in, b_in, w_hid, b_hid, w_out, *, elementwise_bf16):
    # Same numerics mode as the kernel: bf16 MXU operands, f32 accumulation,
    # bias-add/tanh in bf16 (v6e/v7x) or f32 (v5e/other).
    bf = jnp.bfloat16
    ew = bf if elementwise_bf16 else jnp.float32
    a = jnp.dot(x.astype(bf), w_in.astype(bf),
                preferred_element_type=jnp.float32)
    h = jnp.tanh(a.astype(ew) + b_in.astype(ew))
    for l in range(w_hid.shape[0]):
        a = jnp.dot(h.astype(bf), w_hid[l].astype(bf),
                    preferred_element_type=jnp.float32)
        h = jnp.tanh(a.astype(ew) + b_hid[l].astype(ew))
    return jnp.dot(h.astype(bf), w_out.astype(bf),
                   preferred_element_type=jnp.float32)


if __name__ == "__main__":
    # Small shapes consistent with the module's forward: x is [batch, d].
    batch, d, width, depth, dd = 8, 4, 32, 3, 2

    key = jax.random.PRNGKey(0)
    k = jax.random.split(key, 7)

    x = jax.random.normal(k[0], (batch, d), dtype=jnp.float32)

    # Deterministic synthetic parameters (nn.Linear weights stored [in, out]).
    w_in = jax.random.normal(k[1], (d, width), dtype=jnp.float32) * (1.0 / jnp.sqrt(d))
    b_in = jax.random.normal(k[2], (1, width), dtype=jnp.float32) * 0.1
    w_hid = jax.random.normal(k[3], (depth, width, width), dtype=jnp.float32) * (1.0 / jnp.sqrt(width))
    b_hid = jax.random.normal(k[4], (depth, 1, width), dtype=jnp.float32) * 0.1
    w_out = jax.random.normal(k[5], (width, dd), dtype=jnp.float32) * (1.0 / jnp.sqrt(width))

    elementwise_bf16 = _default_elementwise_bf16()
    tol = 1e-1 if elementwise_bf16 else 1e-3

    # One-time parameter padding / casting (hoisted out of the per-call path).
    params = prepare_ffnet_params(w_in, b_in, w_hid, b_hid, w_out,
                                  elementwise_bf16=elementwise_bf16)
    params = jax.tree_util.tree_map(
        lambda v: jax.block_until_ready(v) if isinstance(v, jax.Array) else v,
        params)

    # --- small-batch check (single grid step) ---
    out = jax.block_until_ready(ffnet_forward(x, params))
    ref = ffnet_reference(x, w_in, b_in, w_hid, b_hid, w_out,
                          elementwise_bf16=elementwise_bf16)
    assert out.shape == (batch, dd)
    assert jnp.allclose(out, ref, atol=tol, rtol=tol)

    # --- larger, non-tile-multiple batch: exercises the grid + batch padding ---
    big_batch = 600
    xb = jax.random.normal(k[6], (big_batch, d), dtype=jnp.float32)
    out_b = jax.block_until_ready(ffnet_forward(xb, params, tile_n=256))
    ref_b = ffnet_reference(xb, w_in, b_in, w_hid, b_hid, w_out,
                            elementwise_bf16=elementwise_bf16)
    assert out_b.shape == (big_batch, dd)
    assert jnp.allclose(out_b, ref_b, atol=tol, rtol=tol)

    print("KERNEL_OK")
</pallas_src>

<mosaic_0001>
module attributes {stable_mosaic.version = 11 : i64} {
  func.func @ffnet_kernel(%arg0: i32, %arg1: memref<8x4xf32, #tpu.memory_space<vmem>>, %arg2: memref<4x128xbf16, #tpu.memory_space<vmem>>, %arg3: memref<1x128xf32, #tpu.memory_space<vmem>>, %arg4: memref<3x128x128xbf16, #tpu.memory_space<vmem>>, %arg5: memref<3x1x128xf32, #tpu.memory_space<vmem>>, %arg6: memref<128x128xbf16, #tpu.memory_space<vmem>>, %arg7: memref<8x2xf32, #tpu.memory_space<vmem>>) attributes {dimension_semantics = [#tpu.dimension_semantics<parallel>], iteration_bounds = array<i64: 1>, scalar_prefetch = 0 : i64, scratch_operands = 0 : i64, tpu.core_type = #tpu.core_type<tc>, window_params = [{transform_indices = @transform_0, window_bounds = array<i64: 8, 4>}, {pipeline_mode = #tpu.pipeline_mode<synchronous>, transform_indices = @transform_1, window_bounds = array<i64: 4, 128>}, {pipeline_mode = #tpu.pipeline_mode<synchronous>, transform_indices = @transform_2, window_bounds = array<i64: 1, 128>}, {pipeline_mode = #tpu.pipeline_mode<synchronous>, transform_indices = @transform_3, window_bounds = array<i64: 3, 128, 128>}, {pipeline_mode = #tpu.pipeline_mode<synchronous>, transform_indices = @transform_4, window_bounds = array<i64: 3, 1, 128>}, {pipeline_mode = #tpu.pipeline_mode<synchronous>, transform_indices = @transform_5, window_bounds = array<i64: 128, 128>}, {transform_indices = @transform_6, window_bounds = array<i64: 8, 2>}]} {
    %c0 = arith.constant 0 : index
    %c0_0 = arith.constant 0 : index
    %0 = vector.load %arg1[%c0, %c0_0] : memref<8x4xf32, #tpu.memory_space<vmem>>, vector<8x4xf32>
    %1 = arith.truncf %0 : vector<8x4xf32> to vector<8x4xbf16>
    %c0_1 = arith.constant 0 : index
    %c0_2 = arith.constant 0 : index
    %2 = vector.load %arg2[%c0_1, %c0_2] : memref<4x128xbf16, #tpu.memory_space<vmem>>, vector<4x128xbf16>
    %cst = arith.constant dense<0.000000e+00> : vector<8x128xf32>
    %3 = tpu.matmul %1, %2, %cst {dimension_numbers = #tpu.dot_dimension_numbers<[1], [0], [0], [1], [0, 0, 1, 1], [], []>} : vector<8x4xbf16>, vector<4x128xbf16>, vector<8x128xf32> -> vector<8x128xf32>
    %c0_3 = arith.constant 0 : index
    %c0_4 = arith.constant 0 : index
    %4 = vector.load %arg3[%c0_3, %c0_4] : memref<1x128xf32, #tpu.memory_space<vmem>>, vector<1x128xf32>
    %5 = vector.broadcast %4 : vector<1x128xf32> to vector<8x128xf32>
    %6 = arith.addf %3, %5 : vector<8x128xf32>
    %7 = math.tanh %6 : vector<8x128xf32>
    %8 = arith.truncf %7 : vector<8x128xf32> to vector<8x128xbf16>
    %c0_5 = arith.constant 0 : index
    %c0_6 = arith.constant 0 : index
    %c0_7 = arith.constant 0 : index
    %9 = vector.load %arg4[%c0_5, %c0_6, %c0_7] : memref<3x128x128xbf16, #tpu.memory_space<vmem>>, vector<1x128x128xbf16>
    %10 = vector.shape_cast %9 : vector<1x128x128xbf16> to vector<128x128xbf16>
    %cst_8 = arith.constant dense<0.000000e+00> : vector<8x128xf32>
    %11 = tpu.matmul %8, %10, %cst_8 {dimension_numbers = #tpu.dot_dimension_numbers<[1], [0], [0], [1], [0, 0, 1, 1], [], []>} : vector<8x128xbf16>, vector<128x128xbf16>, vector<8x128xf32> -> vector<8x128xf32>
    %c0_9 = arith.constant 0 : index
    %c0_10 = arith.constant 0 : index
    %c0_11 = arith.constant 0 : index
    %12 = vector.load %arg5[%c0_9, %c0_10, %c0_11] : memref<3x1x128xf32, #tpu.memory_space<vmem>>, vector<1x1x128xf32>
    %13 = vector.shape_cast %12 : vector<1x1x128xf32> to vector<1x128xf32>
    %14 = vector.broadcast %13 : vector<1x128xf32> to vector<8x128xf32>
    %15 = arith.addf %11, %14 : vector<8x128xf32>
    %16 = math.tanh %15 : vector<8x128xf32>
    %17 = arith.truncf %16 : vector<8x128xf32> to vector<8x128xbf16>
    %c1 = arith.constant 1 : index
    %c0_12 = arith.constant 0 : index
    %c0_13 = arith.constant 0 : index
    %18 = vector.load %arg4[%c1, %c0_12, %c0_13] : memref<3x128x128xbf16, #tpu.memory_space<vmem>>, vector<1x128x128xbf16>
    %19 = vector.shape_cast %18 : vector<1x128x128xbf16> to vector<128x128xbf16>
    %cst_14 = arith.constant dense<0.000000e+00> : vector<8x128xf32>
    %20 = tpu.matmul %17, %19, %cst_14 {dimension_numbers = #tpu.dot_dimension_numbers<[1], [0], [0], [1], [0, 0, 1, 1], [], []>} : vector<8x128xbf16>, vector<128x128xbf16>, vector<8x128xf32> -> vector<8x128xf32>
    %c1_15 = arith.constant 1 : index
    %c0_16 = arith.constant 0 : index
    %c0_17 = arith.constant 0 : index
    %21 = vector.load %arg5[%c1_15, %c0_16, %c0_17] : memref<3x1x128xf32, #tpu.memory_space<vmem>>, vector<1x1x128xf32>
    %22 = vector.shape_cast %21 : vector<1x1x128xf32> to vector<1x128xf32>
    %23 = vector.broadcast %22 : vector<1x128xf32> to vector<8x128xf32>
    %24 = arith.addf %20, %23 : vector<8x128xf32>
    %25 = math.tanh %24 : vector<8x128xf32>
    %26 = arith.truncf %25 : vector<8x128xf32> to vector<8x128xbf16>
    %c2 = arith.constant 2 : index
    %c0_18 = arith.constant 0 : index
    %c0_19 = arith.constant 0 : index
    %27 = vector.load %arg4[%c2, %c0_18, %c0_19] : memref<3x128x128xbf16, #tpu.memory_space<vmem>>, vector<1x128x128xbf16>
    %28 = vector.shape_cast %27 : vector<1x128x128xbf16> to vector<128x128xbf16>
    %cst_20 = arith.constant dense<0.000000e+00> : vector<8x128xf32>
    %29 = tpu.matmul %26, %28, %cst_20 {dimension_numbers = #tpu.dot_dimension_numbers<[1], [0], [0], [1], [0, 0, 1, 1], [], []>} : vector<8x128xbf16>, vector<128x128xbf16>, vector<8x128xf32> -> vector<8x128xf32>
    %c2_21 = arith.constant 2 : index
    %c0_22 = arith.constant 0 : index
    %c0_23 = arith.constant 0 : index
    %30 = vector.load %arg5[%c2_21, %c0_22, %c0_23] : memref<3x1x128xf32, #tpu.memory_space<vmem>>, vector<1x1x128xf32>
    %31 = vector.shape_cast %30 : vector<1x1x128xf32> to vector<1x128xf32>
    %32 = vector.broadcast %31 : vector<1x128xf32> to vector<8x128xf32>
    %33 = arith.addf %29, %32 : vector<8x128xf32>
    %34 = math.tanh %33 : vector<8x128xf32>
    %35 = arith.truncf %34 : vector<8x128xf32> to vector<8x128xbf16>
    %c0_24 = arith.constant 0 : index
    %c0_25 = arith.constant 0 : index
    %36 = vector.load %arg6[%c0_24, %c0_25] : memref<128x128xbf16, #tpu.memory_space<vmem>>, vector<128x128xbf16>
    %cst_26 = arith.constant dense<0.000000e+00> : vector<8x128xf32>
    %37 = tpu.matmul %35, %36, %cst_26 {dimension_numbers = #tpu.dot_dimension_numbers<[1], [0], [0], [1], [0, 0, 1, 1], [], []>} : vector<8x128xbf16>, vector<128x128xbf16>, vector<8x128xf32> -> vector<8x128xf32>
    %38 = vector.extract_strided_slice %37 {offsets = [0, 0], sizes = [8, 2], strides = [1, 1]} : vector<8x128xf32> to vector<8x2xf32>
    %c0_27 = arith.constant 0 : index
    %c0_28 = arith.constant 0 : index
    %39 = vector.load %arg7[%c0_27, %c0_28] : memref<8x2xf32, #tpu.memory_space<vmem>>, vector<8x2xf32>
    tpu.vector_store %arg7[%c0_27, %c0_28], %38 {strides = array<i32>} : memref<8x2xf32, #tpu.memory_space<vmem>>, vector<8x2xf32>,
    return
  }
  func.func @transform_0(%arg0: i32) -> (i32, i32) {
    %c0_i32 = arith.constant 0 : i32
    %c0_i32_0 = arith.constant 0 : i32
    return %arg0, %c0_i32 : i32, i32
  }
  func.func @transform_1(%arg0: i32) -> (i32, i32) {
    %c0_i32 = arith.constant 0 : i32
    %c0_i32_0 = arith.constant 0 : i32
    %c0_i32_1 = arith.constant 0 : i32
    return %c0_i32, %c0_i32_0 : i32, i32
  }
  func.func @transform_2(%arg0: i32) -> (i32, i32) {
    %c0_i32 = arith.constant 0 : i32
    %c0_i32_0 = arith.constant 0 : i32
    %c0_i32_1 = arith.constant 0 : i32
    return %c0_i32, %c0_i32_0 : i32, i32
  }
  func.func @transform_3(%arg0: i32) -> (i32, i32, i32) {
    %c0_i32 = arith.constant 0 : i32
    %c0_i32_0 = arith.constant 0 : i32
    %c0_i32_1 = arith.constant 0 : i32
    %c0_i32_2 = arith.constant 0 : i32
    return %c0_i32, %c0_i32_0, %c0_i32_1 : i32, i32, i32
  }
  func.func @transform_4(%arg0: i32) -> (i32, i32, i32) {
    %c0_i32 = arith.constant 0 : i32
    %c0_i32_0 = arith.constant 0 : i32
    %c0_i32_1 = arith.constant 0 : i32
    %c0_i32_2 = arith.constant 0 : i32
    return %c0_i32, %c0_i32_0, %c0_i32_1 : i32, i32, i32
  }
  func.func @transform_5(%arg0: i32) -> (i32, i32) {
    %c0_i32 = arith.constant 0 : i32
    %c0_i32_0 = arith.constant 0 : i32
    %c0_i32_1 = arith.constant 0 : i32
    return %c0_i32, %c0_i32_0 : i32, i32
  }
  func.func @transform_6(%arg0: i32) -> (i32, i32) {
    %c0_i32 = arith.constant 0 : i32
    %c0_i32_0 = arith.constant 0 : i32
    return %arg0, %c0_i32 : i32, i32
  }
}

</mosaic_0001>

<llo_original>
// kernel: tpu_custom_call.1
$region0: #{tpu_custom_call.1}
  #allocation0 [shape = 'u32[]', space=smem, size = 0x4, offset = 0x4, fixed_abs, tag = 'smem constant byte address 0x4 - core index']
  #allocation1 [shape = 'u32[144,128]{1,0:T(1,128)}', space=vmem, size = 0x12000, scoped, tag = 'internal scratch']
  %s0 = inlined_call_operand.vmem [shape: f32[8,4], index: 0, kind: input, shape index: {}]
  %s1 = inlined_call_operand.vmem [shape: bf16[4,128], index: 1, kind: input, shape index: {}]
  %s2 = inlined_call_operand.vmem [shape: f32[1,128], index: 2, kind: input, shape index: {}]
  %s3 = inlined_call_operand.hbm [shape: bf16[3,128,128], index: 3, kind: input, shape index: {}]
  %s4 = inlined_call_operand.vmem [shape: f32[3,1,128], index: 4, kind: input, shape index: {}]
  %s5 = inlined_call_operand.hbm [shape: bf16[128,128], index: 5, kind: input, shape index: {}]
  %s6 = inlined_call_operand.vmem [shape: f32[8,2], index: 6, kind: output, shape index: {}]
  %s7 = sld [smem:[#allocation0]]
  $region42: #{tpu_custom_call.1} parent=0
    _
  %s9 = ssub.s32 1, %s7
  %s10 = scalar_select 0, %s9, %s7
  $region1: #{tpu_custom_call.1} parent=0
    #allocation2 [shape = 'u8[98304]{0}', space=vmem, size = 0x18000, scoped, tag = 'input window, operand 3, single buffered']
    #allocation3 [shape = 's32[1]{0}', space=sflag, size = 0x4, scoped, tag = 'scoped memory for tpu_custom_call.1']
    #allocation4 [shape = 'u8[32768]{0}', space=vmem, size = 0x8000, scoped, tag = 'input window, operand 5, single buffered']
    #allocation5 [shape = 's32[1]{0}', space=sflag, size = 0x4, scoped, tag = 'scoped memory for tpu_custom_call.1']
    %11 = vsyncpa [#allocation3], 0
    %12 = vsyncpa [#allocation5], 0
    // Predicated region
    $region2: #{tpu_custom_call.1} parent=1 // pred_check
      _
    $region3: #{tpu_custom_call.1} parent=1 // pred_check_branch
      %14 = sbr.rel (0) target = $region5
    $region4: #{tpu_custom_call.1} parent=1 // pred_region
      _
    $region5: #{tpu_custom_call.1} parent=1 // pred_fallthru
      _
    // Predicated region
    $region6: #{tpu_custom_call.1} parent=1 // pred_check
      _
    $region7: #{tpu_custom_call.1} parent=1 // pred_check_branch
      %16 = sbr.rel (0) target = $region9
    $region8: #{tpu_custom_call.1} parent=1 // pred_region
      _
    $region9: #{tpu_custom_call.1} parent=1 // pred_fallthru
      _
    // Predicated region
    $region10: #{tpu_custom_call.1} parent=1 // pred_check
      _
    $region11: #{tpu_custom_call.1} parent=1 // pred_check_branch
      %18 = sbr.rel (0) target = $region13
    $region12: #{tpu_custom_call.1} parent=1 // pred_region
      _
    $region13: #{tpu_custom_call.1} parent=1 // pred_fallthru
      _
    // Predicated region
    $region14: #{tpu_custom_call.1} parent=1 // pred_check
      _
    $region15: #{tpu_custom_call.1} parent=1 // pred_check_branch
      %20 = sbr.rel (0) target = $region17
    $region16: #{tpu_custom_call.1} parent=1 // pred_region
      %s22 = ssub.s32 3072, 3072
      %23 = vsyncadd [#allocation3], %s22
      %s24 = sshll.u32 [#allocation2], 4
      %s25 = int_to_ptr.vmem [resolvable:$true] %s24
      %30 = dma.hbm_to_vmem [thread:$0]  %s3, 3072, %s25, [#allocation3], 64, 64, 4
    $region17: #{tpu_custom_call.1} parent=1 // pred_fallthru
      _
    // Predicated region
    $region18: #{tpu_custom_call.1} parent=1 // pred_check
      _
    $region19: #{tpu_custom_call.1} parent=1 // pred_check_branch
      %32 = sbr.rel (0) target = $region21
    $region20: #{tpu_custom_call.1} parent=1 // pred_region
      _
    $region21: #{tpu_custom_call.1} parent=1 // pred_fallthru
      _
    // Predicated region
    $region22: #{tpu_custom_call.1} parent=1 // pred_check
      _
    $region23: #{tpu_custom_call.1} parent=1 // pred_check_branch
      %34 = sbr.rel (0) target = $region25
    $region24: #{tpu_custom_call.1} parent=1 // pred_region
      %s36 = ssub.s32 1024, 1024
      %37 = vsyncadd [#allocation5], %s36
      %s38 = sshll.u32 [#allocation4], 4
      %s39 = int_to_ptr.vmem [resolvable:$true] %s38
      %44 = dma.hbm_to_vmem [thread:$0]  %s5, 1024, %s39, [#allocation5], 64, 64, 4
    $region25: #{tpu_custom_call.1} parent=1 // pred_fallthru
      _
    // Predicated region
    $region26: #{tpu_custom_call.1} parent=1 // pred_check
      _
    $region27: #{tpu_custom_call.1} parent=1 // pred_check_branch
      %46 = sbr.rel (0) target = $region29
    $region28: #{tpu_custom_call.1} parent=1 // pred_region
      %47 = dma.done [#allocation3], 3072
    $region29: #{tpu_custom_call.1} parent=1 // pred_fallthru
      _
    // Predicated region
    $region30: #{tpu_custom_call.1} parent=1 // pred_check
      _
    $region31: #{tpu_custom_call.1} parent=1 // pred_check_branch
      %49 = sbr.rel (0) target = $region33
    $region32: #{tpu_custom_call.1} parent=1 // pred_region
      %50 = dma.done [#allocation5], 1024
    $region33: #{tpu_custom_call.1} parent=1 // pred_fallthru
      _
    %v52 = vld [vmem:[%s0] sm:$0xff]
    %v53 = vpack.c.bf16 %v52, %v52
    %v54 = vld [vmem:[%s1] sm:$0x3]
    %v55 = vld [vmem:[%s2] sm:$0x1]
    %v57 = vlaneseq
    %v58 = vshrl.u32 %v57, 7
    %v59 = vsub.s32 0, %v58
    %v60 = vrot.slane %v55, %v59
    %vm62 = vcmask 31744
    %v64 = vsel %vm62, %v53, 0
    %vm66 = vcmask 1041408
    %v68 = vsel %vm66, %v54, 0
    %70 = vmatprep.subr.bf16.mxu0 0
    %71 = vmatpush1.bf16.msra.mxu0 0
    %72 = vmatprep.subr.bf16.mxu0 0
    %73 = vmatpush1.bf16.msra.mxu0 0
    %74 = vmatprep.subr.bf16.mxu0 0
    %75 = vmatpush1.bf16.msra.mxu0 0
    %76 = vmatprep.subr.bf16.mxu0 0
    %77 = vmatpush1.bf16.msra.mxu0 0
    %78 = vmatprep.subr.bf16.mxu0 0
    %79 = vmatpush1.bf16.msra.mxu0 0
    %80 = vmatprep.subr.bf16.mxu0 0
    %81 = vmatpush1.bf16.msra.mxu0 0
    %82 = vmatprep.subr.bf16.mxu0 0
    %83 = vmatpush1.bf16.msra.mxu0 0
    %84 = vmatprep.subr.bf16.mxu0 0
    %85 = vmatpush1.bf16.msra.mxu0 %v68
    %86 = vmatprep.subr.bf16.mxu0 0
    %87 = vmatpush2.bf16.msra.mxu0 0
    %88 = vmatprep.subr.bf16.mxu0 0
    %89 = vmatpush2.bf16.msra.mxu0 0
    %90 = vmatprep.subr.bf16.mxu0 0
    %91 = vmatpush2.bf16.msra.mxu0 0
    %92 = vmatprep.subr.bf16.mxu0 0
    %93 = vmatpush2.bf16.msra.mxu0 0
    %94 = vmatprep.subr.bf16.mxu0 0
    %95 = vmatpush2.bf16.msra.mxu0 0
    %96 = vmatprep.subr.bf16.mxu0 0
    %97 = vmatpush2.bf16.msra.mxu0 0
    %98 = vmatprep.subr.bf16.mxu0 0
    %99 = vmatpush2.bf16.msra.mxu0 0
    %100 = vmatprep.subr.bf16.mxu0 0
    %101 = vmatpush2.bf16.msra.mxu0 0
    %102 = vmatprep.mubr.bf16.mxu0 0
    %103 = vmatmul.mubr.bf16.gmra.mxu0 %v64
    %v104 = vpop.f32.mrf.mxu0
    %v105 = vadd.f32 %v60, %v104
    %v106 = vpop.f32.mrf.mxu0
    %v107 = vpop.f32.mrf.mxu0
    %v108 = vpop.f32.mrf.mxu0
    %109 = vdwg.mxu0
    %v110 = vtanh.pop %v105
    %v111 = vpack.c.bf16 %v110, %v110
    %v112 = vld [vmem:[#allocation2] sm:$0xf]
    %v113 = vld [vmem:[#allocation2 + $0x4] sm:$0xf]
    %v114 = vld [vmem:[#allocation2 + $0x8] sm:$0xf]
    %v115 = vld [vmem:[#allocation2 + $0xc] sm:$0xf]
    %v116 = vld [vmem:[#allocation2 + $0x10] sm:$0xf]
    %v117 = vld [vmem:[#allocation2 + $0x14] sm:$0xf]
    %v118 = vld [vmem:[#allocation2 + $0x18] sm:$0xf]
    %v119 = vld [vmem:[#allocation2 + $0x1c] sm:$0xf]
    %v120 = vld [vmem:[#allocation2 + $0x20] sm:$0xf]
    %v121 = vld [vmem:[#allocation2 + $0x24] sm:$0xf]
    %v122 = vld [vmem:[#allocation2 + $0x28] sm:$0xf]
    %v123 = vld [vmem:[#allocation2 + $0x2c] sm:$0xf]
    %v124 = vld [vmem:[#allocation2 + $0x30] sm:$0xf]
    %v125 = vld [vmem:[#allocation2 + $0x34] sm:$0xf]
    %v126 = vld [vmem:[#allocation2 + $0x38] sm:$0xf]
    %v127 = vld [vmem:[#allocation2 + $0x3c] sm:$0xf]
    %v128 = vld [vmem:[%s4] sm:$0x1]
    %v130 = vlaneseq
    %v131 = vshrl.u32 %v130, 7
    %v132 = vsub.s32 0, %v131
    %v133 = vrot.slane %v128, %v132
    %v151 = vunpack.c.l.b16 %v112
    %v152 = vunpack.c.l.b16 %v113
    %v153 = vunpack.c.l.b16 %v114
    %v154 = vunpack.c.l.b16 %v115
    %v155 = vunpack.c.l.b16 %v116
    %v156 = vunpack.c.l.b16 %v117
    %v157 = vunpack.c.l.b16 %v118
    %v158 = vunpack.c.l.b16 %v119
    %v159 = vunpack.c.l.b16 %v120
    %v160 = vunpack.c.l.b16 %v121
    %v161 = vunpack.c.l.b16 %v122
    %v162 = vunpack.c.l.b16 %v123
    %v163 = vunpack.c.l.b16 %v124
    %v164 = vunpack.c.l.b16 %v125
    %v165 = vunpack.c.l.b16 %v126
    %v166 = vunpack.c.l.b16 %v127
    %v167 = vpack.c.b16 %v152, %v151
    %v168 = vpack.c.b16 %v154, %v153
    %v169 = vpack.c.b16 %v156, %v155
    %v170 = vpack.c.b16 %v158, %v157
    %v171 = vpack.c.b16 %v160, %v159
    %v172 = vpack.c.b16 %v162, %v161
    %v173 = vpack.c.b16 %v164, %v163
    %v174 = vpack.c.b16 %v166, %v165
    %183 = vmatprep.subr.bf16.mxu0 0
    %184 = vmatpush1.bf16.msra.mxu0 %v174
    %185 = vmatprep.subr.bf16.mxu0 0
    %186 = vmatpush1.bf16.msra.mxu0 %v173
    %187 = vmatprep.subr.bf16.mxu0 0
    %188 = vmatpush1.bf16.msra.mxu0 %v172
    %189 = vmatprep.subr.bf16.mxu0 0
    %190 = vmatpush1.bf16.msra.mxu0 %v171
    %191 = vmatprep.subr.bf16.mxu0 0
    %192 = vmatpush1.bf16.msra.mxu0 %v170
    %193 = vmatprep.subr.bf16.mxu0 0
    %194 = vmatpush1.bf16.msra.mxu0 %v169
    %195 = vmatprep.subr.bf16.mxu0 0
    %196 = vmatpush1.bf16.msra.mxu0 %v168
    %197 = vmatprep.subr.bf16.mxu0 0
    %198 = vmatpush1.bf16.msra.mxu0 %v167
    %199 = vmatprep.subr.bf16.mxu0 0
    %200 = vmatpush2.bf16.msra.mxu0 0
    %201 = vmatprep.subr.bf16.mxu0 0
    %202 = vmatpush2.bf16.msra.mxu0 0
    %203 = vmatprep.subr.bf16.mxu0 0
    %204 = vmatpush2.bf16.msra.mxu0 0
    %205 = vmatprep.subr.bf16.mxu0 0
    %206 = vmatpush2.bf16.msra.mxu0 0
    %207 = vmatprep.subr.bf16.mxu0 0
    %208 = vmatpush2.bf16.msra.mxu0 0
    %209 = vmatprep.subr.bf16.mxu0 0
    %210 = vmatpush2.bf16.msra.mxu0 0
    %211 = vmatprep.subr.bf16.mxu0 0
    %212 = vmatpush2.bf16.msra.mxu0 0
    %213 = vmatprep.subr.bf16.mxu0 0
    %214 = vmatpush2.bf16.msra.mxu0 0
    %215 = vmatprep.mubr.bf16.mxu0 0
    %216 = vmatmul.mubr.bf16.gmra.mxu0 %v111
    %v217 = vpop.f32.mrf.mxu0
    %v218 = vadd.f32 %v133, %v217
    %v219 = vpop.f32.mrf.mxu0
    %v220 = vpop.f32.mrf.mxu0
    %v221 = vpop.f32.mrf.mxu0
    %222 = vdwg.mxu0
    %v223 = vtanh.pop %v218
    %v224 = vpack.c.bf16 %v223, %v223
    %s225 = scalar_lea.vmem [#allocation2], 64
    %v226 = vld [vmem:[%s225] sm:$0xf]
    %v227 = vld [vmem:[%s225 + $0x4] sm:$0xf]
    %v228 = vld [vmem:[%s225 + $0x8] sm:$0xf]
    %v229 = vld [vmem:[%s225 + $0xc] sm:$0xf]
    %v230 = vld [vmem:[%s225 + $0x10] sm:$0xf]
    %v231 = vld [vmem:[%s225 + $0x14] sm:$0xf]
    %v232 = vld [vmem:[%s225 + $0x18] sm:$0xf]
    %v233 = vld [vmem:[%s225 + $0x1c] sm:$0xf]
    %v234 = vld [vmem:[%s225 + $0x20] sm:$0xf]
    %v235 = vld [vmem:[%s225 + $0x24] sm:$0xf]
    %v236 = vld [vmem:[%s225 + $0x28] sm:$0xf]
    %v237 = vld [vmem:[%s225 + $0x2c] sm:$0xf]
    %v238 = vld [vmem:[%s225 + $0x30] sm:$0xf]
    %v239 = vld [vmem:[%s225 + $0x34] sm:$0xf]
    %v240 = vld [vmem:[%s225 + $0x38] sm:$0xf]
    %v241 = vld [vmem:[%s225 + $0x3c] sm:$0xf]
    %s242 = scalar_lea.vmem %s4, 1
    %v243 = vld [vmem:[%s242] sm:$0x1]
    %v245 = vlaneseq
    %v246 = vshrl.u32 %v245, 7
    %v247 = vsub.s32 0, %v246
    %v248 = vrot.slane %v243, %v247
    %v266 = vunpack.c.l.b16 %v226
    %v267 = vunpack.c.l.b16 %v227
    %v268 = vunpack.c.l.b16 %v228
    %v269 = vunpack.c.l.b16 %v229
    %v270 = vunpack.c.l.b16 %v230
    %v271 = vunpack.c.l.b16 %v231
    %v272 = vunpack.c.l.b16 %v232
    %v273 = vunpack.c.l.b16 %v233
    %v274 = vunpack.c.l.b16 %v234
    %v275 = vunpack.c.l.b16 %v235
    %v276 = vunpack.c.l.b16 %v236
    %v277 = vunpack.c.l.b16 %v237
    %v278 = vunpack.c.l.b16 %v238
    %v279 = vunpack.c.l.b16 %v239
    %v280 = vunpack.c.l.b16 %v240
    %v281 = vunpack.c.l.b16 %v241
    %v282 = vpack.c.b16 %v267, %v266
    %v283 = vpack.c.b16 %v269, %v268
    %v284 = vpack.c.b16 %v271, %v270
    %v285 = vpack.c.b16 %v273, %v272
    %v286 = vpack.c.b16 %v275, %v274
    %v287 = vpack.c.b16 %v277, %v276
    %v288 = vpack.c.b16 %v279, %v278
    %v289 = vpack.c.b16 %v281, %v280
    %298 = vmatprep.subr.bf16.mxu0 0
    %299 = vmatpush1.bf16.msra.mxu0 %v289
    %300 = vmatprep.subr.bf16.mxu0 0
    %301 = vmatpush1.bf16.msra.mxu0 %v288
    %302 = vmatprep.subr.bf16.mxu0 0
    %303 = vmatpush1.bf16.msra.mxu0 %v287
    %304 = vmatprep.subr.bf16.mxu0 0
    %305 = vmatpush1.bf16.msra.mxu0 %v286
    %306 = vmatprep.subr.bf16.mxu0 0
    %307 = vmatpush1.bf16.msra.mxu0 %v285
    %308 = vmatprep.subr.bf16.mxu0 0
    %309 = vmatpush1.bf16.msra.mxu0 %v284
    %310 = vmatprep.subr.bf16.mxu0 0
    %311 = vmatpush1.bf16.msra.mxu0 %v283
    %312 = vmatprep.subr.bf16.mxu0 0
    %313 = vmatpush1.bf16.msra.mxu0 %v282
    %314 = vmatprep.subr.bf16.mxu0 0
    %315 = vmatpush2.bf16.msra.mxu0 0
    %316 = vmatprep.subr.bf16.mxu0 0
    %317 = vmatpush2.bf16.msra.mxu0 0
    %318 = vmatprep.subr.bf16.mxu0 0
    %319 = vmatpush2.bf16.msra.mxu0 0
    %320 = vmatprep.subr.bf16.mxu0 0
    %321 = vmatpush2.bf16.msra.mxu0 0
    %322 = vmatprep.subr.bf16.mxu0 0
    %323 = vmatpush2.bf16.msra.mxu0 0
    %324 = vmatprep.subr.bf16.mxu0 0
    %325 = vmatpush2.bf16.msra.mxu0 0
    %326 = vmatprep.subr.bf16.mxu0 0
    %327 = vmatpush2.bf16.msra.mxu0 0
    %328 = vmatprep.subr.bf16.mxu0 0
    %329 = vmatpush2.bf16.msra.mxu0 0
    %330 = vmatprep.mubr.bf16.mxu0 0
    %331 = vmatmul.mubr.bf16.gmra.mxu0 %v224
    %v332 = vpop.f32.mrf.mxu0
    %v333 = vadd.f32 %v248, %v332
    %v334 = vpop.f32.mrf.mxu0
    %v335 = vpop.f32.mrf.mxu0
    %v336 = vpop.f32.mrf.mxu0
    %337 = vdwg.mxu0
    %v338 = vtanh.pop %v333
    %v339 = vpack.c.bf16 %v338, %v338
    %s340 = scalar_lea.vmem [#allocation2], 128
    %v341 = vld [vmem:[%s340] sm:$0xf]
    %v342 = vld [vmem:[%s340 + $0x4] sm:$0xf]
    %v343 = vld [vmem:[%s340 + $0x8] sm:$0xf]
    %v344 = vld [vmem:[%s340 + $0xc] sm:$0xf]
    %v345 = vld [vmem:[%s340 + $0x10] sm:$0xf]
    %v346 = vld [vmem:[%s340 + $0x14] sm:$0xf]
    %v347 = vld [vmem:[%s340 + $0x18] sm:$0xf]
    %v348 = vld [vmem:[%s340 + $0x1c] sm:$0xf]
    %v349 = vld [vmem:[%s340 + $0x20] sm:$0xf]
    %v350 = vld [vmem:[%s340 + $0x24] sm:$0xf]
    %v351 = vld [vmem:[%s340 + $0x28] sm:$0xf]
    %v352 = vld [vmem:[%s340 + $0x2c] sm:$0xf]
    %v353 = vld [vmem:[%s340 + $0x30] sm:$0xf]
    %v354 = vld [vmem:[%s340 + $0x34] sm:$0xf]
    %v355 = vld [vmem:[%s340 + $0x38] sm:$0xf]
    %v356 = vld [vmem:[%s340 + $0x3c] sm:$0xf]
    %s357 = scalar_lea.vmem %s4, 2
    %v358 = vld [vmem:[%s357] sm:$0x1]
    %v360 = vlaneseq
    %v361 = vshrl.u32 %v360, 7
    %v362 = vsub.s32 0, %v361
    %v363 = vrot.slane %v358, %v362
    %v381 = vunpack.c.l.b16 %v341
    %v382 = vunpack.c.l.b16 %v342
    %v383 = vunpack.c.l.b16 %v343
    %v384 = vunpack.c.l.b16 %v344
    %v385 = vunpack.c.l.b16 %v345
    %v386 = vunpack.c.l.b16 %v346
    %v387 = vunpack.c.l.b16 %v347
    %v388 = vunpack.c.l.b16 %v348
    %v389 = vunpack.c.l.b16 %v349
    %v390 = vunpack.c.l.b16 %v350
    %v391 = vunpack.c.l.b16 %v351
    %v392 = vunpack.c.l.b16 %v352
    %v393 = vunpack.c.l.b16 %v353
    %v394 = vunpack.c.l.b16 %v354
    %v395 = vunpack.c.l.b16 %v355
    %v396 = vunpack.c.l.b16 %v356
    %v397 = vpack.c.b16 %v382, %v381
    %v398 = vpack.c.b16 %v384, %v383
    %v399 = vpack.c.b16 %v386, %v385
    %v400 = vpack.c.b16 %v388, %v387
    %v401 = vpack.c.b16 %v390, %v389
    %v402 = vpack.c.b16 %v392, %v391
    %v403 = vpack.c.b16 %v394, %v393
    %v404 = vpack.c.b16 %v396, %v395
    %413 = vmatprep.subr.bf16.mxu0 0
    %414 = vmatpush1.bf16.msra.mxu0 %v404
    %415 = vmatprep.subr.bf16.mxu0 0
    %416 = vmatpush1.bf16.msra.mxu0 %v403
    %417 = vmatprep.subr.bf16.mxu0 0
    %418 = vmatpush1.bf16.msra.mxu0 %v402
    %419 = vmatprep.subr.bf16.mxu0 0
    %420 = vmatpush1.bf16.msra.mxu0 %v401
    %421 = vmatprep.subr.bf16.mxu0 0
    %422 = vmatpush1.bf16.msra.mxu0 %v400
    %423 = vmatprep.subr.bf16.mxu0 0
    %424 = vmatpush1.bf16.msra.mxu0 %v399
    %425 = vmatprep.subr.bf16.mxu0 0
    %426 = vmatpush1.bf16.msra.mxu0 %v398
    %427 = vmatprep.subr.bf16.mxu0 0
    %428 = vmatpush1.bf16.msra.mxu0 %v397
    %429 = vmatprep.subr.bf16.mxu0 0
    %430 = vmatpush2.bf16.msra.mxu0 0
    %431 = vmatprep.subr.bf16.mxu0 0
    %432 = vmatpush2.bf16.msra.mxu0 0
    %433 = vmatprep.subr.bf16.mxu0 0
    %434 = vmatpush2.bf16.msra.mxu0 0
    %435 = vmatprep.subr.bf16.mxu0 0
    %436 = vmatpush2.bf16.msra.mxu0 0
    %437 = vmatprep.subr.bf16.mxu0 0
    %438 = vmatpush2.bf16.msra.mxu0 0
    %439 = vmatprep.subr.bf16.mxu0 0
    %440 = vmatpush2.bf16.msra.mxu0 0
    %441 = vmatprep.subr.bf16.mxu0 0
    %442 = vmatpush2.bf16.msra.mxu0 0
    %443 = vmatprep.subr.bf16.mxu0 0
    %444 = vmatpush2.bf16.msra.mxu0 0
    %445 = vmatprep.mubr.bf16.mxu0 0
    %446 = vmatmul.mubr.bf16.gmra.mxu0 %v339
    %v447 = vpop.f32.mrf.mxu0
    %v448 = vadd.f32 %v363, %v447
    %v449 = vpop.f32.mrf.mxu0
    %v450 = vpop.f32.mrf.mxu0
    %v451 = vpop.f32.mrf.mxu0
    %452 = vdwg.mxu0
    %v453 = vtanh.pop %v448
    %v454 = vpack.c.bf16 %v453, %v453
    %v455 = vld [vmem:[#allocation4] sm:$0xf]
    %v456 = vld [vmem:[#allocation4 + $0x4] sm:$0xf]
    %v457 = vld [vmem:[#allocation4 + $0x8] sm:$0xf]
    %v458 = vld [vmem:[#allocation4 + $0xc] sm:$0xf]
    %v459 = vld [vmem:[#allocation4 + $0x10] sm:$0xf]
    %v460 = vld [vmem:[#allocation4 + $0x14] sm:$0xf]
    %v461 = vld [vmem:[#allocation4 + $0x18] sm:$0xf]
    %v462 = vld [vmem:[#allocation4 + $0x1c] sm:$0xf]
    %v463 = vld [vmem:[#allocation4 + $0x20] sm:$0xf]
    %v464 = vld [vmem:[#allocation4 + $0x24] sm:$0xf]
    %v465 = vld [vmem:[#allocation4 + $0x28] sm:$0xf]
    %v466 = vld [vmem:[#allocation4 + $0x2c] sm:$0xf]
    %v467 = vld [vmem:[#allocation4 + $0x30] sm:$0xf]
    %v468 = vld [vmem:[#allocation4 + $0x34] sm:$0xf]
    %v469 = vld [vmem:[#allocation4 + $0x38] sm:$0xf]
    %v470 = vld [vmem:[#allocation4 + $0x3c] sm:$0xf]
    %v487 = vunpack.c.l.b16 %v455
    %v488 = vunpack.c.l.b16 %v456
    %v489 = vunpack.c.l.b16 %v457
    %v490 = vunpack.c.l.b16 %v458
    %v491 = vunpack.c.l.b16 %v459
    %v492 = vunpack.c.l.b16 %v460
    %v493 = vunpack.c.l.b16 %v461
    %v494 = vunpack.c.l.b16 %v462
    %v495 = vunpack.c.l.b16 %v463
    %v496 = vunpack.c.l.b16 %v464
    %v497 = vunpack.c.l.b16 %v465
    %v498 = vunpack.c.l.b16 %v466
    %v499 = vunpack.c.l.b16 %v467
    %v500 = vunpack.c.l.b16 %v468
    %v501 = vunpack.c.l.b16 %v469
    %v502 = vunpack.c.l.b16 %v470
    %v503 = vpack.c.b16 %v488, %v487
    %v504 = vpack.c.b16 %v490, %v489
    %v505 = vpack.c.b16 %v492, %v491
    %v506 = vpack.c.b16 %v494, %v493
    %v507 = vpack.c.b16 %v496, %v495
    %v508 = vpack.c.b16 %v498, %v497
    %v509 = vpack.c.b16 %v500, %v499
    %v510 = vpack.c.b16 %v502, %v501
    %519 = vmatprep.subr.bf16.mxu0 0
    %520 = vmatpush1.bf16.msra.mxu0 %v510
    %521 = vmatprep.subr.bf16.mxu0 0
    %522 = vmatpush1.bf16.msra.mxu0 %v509
    %523 = vmatprep.subr.bf16.mxu0 0
    %524 = vmatpush1.bf16.msra.mxu0 %v508
    %525 = vmatprep.subr.bf16.mxu0 0
    %526 = vmatpush1.bf16.msra.mxu0 %v507
    %527 = vmatprep.subr.bf16.mxu0 0
    %528 = vmatpush1.bf16.msra.mxu0 %v506
    %529 = vmatprep.subr.bf16.mxu0 0
    %530 = vmatpush1.bf16.msra.mxu0 %v505
    %531 = vmatprep.subr.bf16.mxu0 0
    %532 = vmatpush1.bf16.msra.mxu0 %v504
    %533 = vmatprep.subr.bf16.mxu0 0
    %534 = vmatpush1.bf16.msra.mxu0 %v503
    %535 = vmatprep.subr.bf16.mxu0 0
    %536 = vmatpush2.bf16.msra.mxu0 0
    %537 = vmatprep.subr.bf16.mxu0 0
    %538 = vmatpush2.bf16.msra.mxu0 0
    %539 = vmatprep.subr.bf16.mxu0 0
    %540 = vmatpush2.bf16.msra.mxu0 0
    %541 = vmatprep.subr.bf16.mxu0 0
    %542 = vmatpush2.bf16.msra.mxu0 0
    %543 = vmatprep.subr.bf16.mxu0 0
    %544 = vmatpush2.bf16.msra.mxu0 0
    %545 = vmatprep.subr.bf16.mxu0 0
    %546 = vmatpush2.bf16.msra.mxu0 0
    %547 = vmatprep.subr.bf16.mxu0 0
    %548 = vmatpush2.bf16.msra.mxu0 0
    %549 = vmatprep.subr.bf16.mxu0 0
    %550 = vmatpush2.bf16.msra.mxu0 0
    %551 = vmatprep.mubr.bf16.mxu0 0
    %552 = vmatmul.mubr.bf16.gmra.mxu0 %v454
    %v553 = vpop.f32.mrf.mxu0
    %v554 = vadd.f32 0.0, %v553
    %v555 = vpop.f32.mrf.mxu0
    %v556 = vpop.f32.mrf.mxu0
    %v557 = vpop.f32.mrf.mxu0
    %558 = vdwg.mxu0
    %vm559 = vcmask 15360
    %560 = vst.msk [vmem:[%s6] sm:$0xff] %vm559, %v554
    // Predicated region
    $region34: #{tpu_custom_call.1} parent=1 // pred_check
      _
    $region35: #{tpu_custom_call.1} parent=1 // pred_check_branch
      %562 = sbr.rel (0) target = $region37
    $region36: #{tpu_custom_call.1} parent=1 // pred_region
      _
    $region37: #{tpu_custom_call.1} parent=1 // pred_fallthru
      _
    // Predicated region
    $region38: #{tpu_custom_call.1} parent=1 // pred_check
      _
    $region39: #{tpu_custom_call.1} parent=1 // pred_check_branch
      %564 = sbr.rel (0) target = $region41
    $region40: #{tpu_custom_call.1} parent=1 // pred_region
      _
    $region41: #{tpu_custom_call.1} parent=1 // pred_fallthru
      _
    %565 = vsyncpa [#allocation3], 1
    %566 = vsyncpa [#allocation5], 1

</llo_original>
